<compile_context>
chip_gen: v5e
topology: v5e:2x2
jax: 0.10.0
libtpu: 0.0.40
codegen_flags: <defaults>
</compile_context>

<pallas_src>
from functools import partial

import jax
import jax.numpy as jnp
from jax.experimental import pallas as pl
from jax.experimental.pallas import tpu as pltpu


def _distill_loss_kernel(student_ref, teacher_ref, labels_ref, out_ref, *,
                         inv_temp, n_valid, tile_rows, needs_mask):
    i = pl.program_id(0)

    s = student_ref[...].astype(jnp.float32) * inv_temp
    t = teacher_ref[...].astype(jnp.float32) * inv_temp

    def _softmax(x):
        m = jnp.max(x, axis=-1, keepdims=True)
        e = jnp.exp(x - m)
        return e * pl.reciprocal(jnp.sum(e, axis=-1, keepdims=True), approx=False)

    p_s = _softmax(s)   # softmax(student / T)
    p_t = _softmax(t)   # softmax(teacher / T)

    # CrossEntropyLoss applies log_softmax to its *input* -> log_softmax of the
    # already-softmaxed student probabilities (intentionally mirrors the PyTorch code).
    # p_s is in [0, 1], so no max-shift is needed: log_softmax is shift-invariant.
    log_sm = p_s - jnp.log(jnp.sum(jnp.exp(p_s), axis=-1, keepdims=True))

    tn, c = log_sm.shape
    class_ids = jax.lax.broadcasted_iota(jnp.int32, (tn, c), 1)
    onehot = (class_ids == labels_ref[...]).astype(jnp.float32)   # labels_ref: (tn, 1)

    # Fused: loss1 numerator + loss2 numerator in one elementwise expr + one reduce.
    fused = (onehot + p_t) * log_sm

    if needs_mask:
        # Zero out rows that are only batch padding (global row index >= n_valid).
        row_ids = jax.lax.broadcasted_iota(jnp.int32, (tn, 1), 0) + i * tile_rows
        fused = fused * (row_ids < n_valid).astype(jnp.float32)

    # Per-block partial sum: reduce over rows only (sublanes); lanes stay dense so the
    # store is a full-width vst. Final cross-lane reduce happens once, in the wrapper.
    partial_row = -jnp.sum(fused, axis=0, keepdims=True)     # (1, C)
    out_ref[...] = partial_row[None]                          # (1, 1, C)


def distillation_loss(teacher_logits, student_logits, labels, temperature, *,
                      tile_rows=None, vmem_input_budget_bytes=8 * 1024 * 1024):
    n, c = student_logits.shape
    assert teacher_logits.shape == (n, c)
    inv_temp = 1.0 / float(temperature)

    # --- tile sizing: 2 logits inputs x 2 pipeline buffers x tile_rows x C x itemsize
    #     must fit comfortably in scoped VMEM on every generation (incl. v7x 64 MiB).
    itemsize = max(jnp.dtype(student_logits.dtype).itemsize,
                   jnp.dtype(teacher_logits.dtype).itemsize)
    if tile_rows is None:
        rows_cap = vmem_input_budget_bytes // (2 * 2 * c * itemsize)
        rows_cap = max(8, min(1024, (rows_cap // 8) * 8))
        tile_rows = rows_cap

    if n <= tile_rows:
        tile_rows = n            # single block covering the whole batch
        n_pad = n
    else:
        tile_rows = max(8, (tile_rows // 8) * 8)
        n_pad = ((n + tile_rows - 1) // tile_rows) * tile_rows

    num_blocks = n_pad // tile_rows
    needs_mask = n_pad != n

    labels2d = labels.astype(jnp.int32).reshape(n, 1)
    if needs_mask:
        pad = n_pad - n
        student_logits = jnp.pad(student_logits, ((0, pad), (0, 0)))
        teacher_logits = jnp.pad(teacher_logits, ((0, pad), (0, 0)))
        labels2d = jnp.pad(labels2d, ((0, pad), (0, 0)), constant_values=-1)

    kernel = partial(_distill_loss_kernel,
                     inv_temp=inv_temp, n_valid=n,
                     tile_rows=tile_rows, needs_mask=needs_mask)

    partials = pl.pallas_call(
        kernel,
        out_shape=jax.ShapeDtypeStruct((num_blocks, 1, c), jnp.float32),
        grid_spec=pltpu.PrefetchScalarGridSpec(
            num_scalar_prefetch=0,
            grid=(num_blocks,),
            in_specs=[
                pl.BlockSpec((tile_rows, c), lambda i: (i, 0)),   # student logits tile
                pl.BlockSpec((tile_rows, c), lambda i: (i, 0)),   # teacher logits tile
                pl.BlockSpec((tile_rows, 1), lambda i: (i, 0)),   # hard labels tile
            ],
            out_specs=pl.BlockSpec((1, 1, c), lambda i: (i, 0, 0)),  # per-block partial row
        ),
        compiler_params=pltpu.CompilerParams(
            dimension_semantics=("parallel",),      # megacore-shardable on v7x
            vmem_limit_bytes=32 * 1024 * 1024,
        ),
    )(student_logits, teacher_logits, labels2d)

    # (loss1/N + loss2/N) / 2 == sum((onehot + p_t) * (-log_sm)) / (2N)
    return jnp.sum(partials) / (2.0 * n)


def _reference_loss(teacher_logits, student_logits, labels, temperature):
    p_s = jax.nn.softmax(student_logits / temperature, axis=1)
    p_t = jax.nn.softmax(teacher_logits / temperature, axis=1)
    log_sm = jax.nn.log_softmax(p_s, axis=1)
    n = labels.shape[0]
    loss1 = -jnp.mean(log_sm[jnp.arange(n), labels])
    loss2 = -jnp.mean(jnp.sum(p_t * log_sm, axis=1))
    return (loss1 + loss2) / 2.0


if __name__ == "__main__":
    # `temperature` is the module's only __init__ parameter; set deterministically.
    temperature = 2.0

    # Small demo shape (single-block fast path).
    N, C = 16, 32
    key = jax.random.PRNGKey(0)
    k1, k2, k3 = jax.random.split(key, 3)
    teacher_logits = jax.random.normal(k1, (N, C), dtype=jnp.float32)
    student_logits = jax.random.normal(k2, (N, C), dtype=jnp.float32)
    labels = jax.random.randint(k3, (N,), 0, C, dtype=jnp.int32)

    loss = distillation_loss(teacher_logits, student_logits, labels, temperature)
    loss = jax.block_until_ready(loss)
    ref = _reference_loss(teacher_logits, student_logits, labels, temperature)
    assert jnp.allclose(loss, ref, atol=1e-5, rtol=1e-5), (loss, ref)

    # Multi-block + padding path (exercises parallel grid + row masking).
    N2, C2 = 40, 256
    k4, k5, k6 = jax.random.split(jax.random.PRNGKey(1), 3)
    t2 = jax.random.normal(k4, (N2, C2), dtype=jnp.float32)
    s2 = jax.random.normal(k5, (N2, C2), dtype=jnp.float32)
    l2 = jax.random.randint(k6, (N2,), 0, C2, dtype=jnp.int32)
    loss2 = distillation_loss(t2, s2, l2, temperature, tile_rows=16)
    loss2 = jax.block_until_ready(loss2)
    ref2 = _reference_loss(t2, s2, l2, temperature)
    assert jnp.allclose(loss2, ref2, atol=1e-5, rtol=1e-5), (loss2, ref2)

    print("KERNEL_OK")
</pallas_src>

<mosaic_0001>
module attributes {stable_mosaic.version = 11 : i64} {
  func.func @_distill_loss_kernel(%arg0: i32, %arg1: memref<16x32xf32, #tpu.memory_space<vmem>>, %arg2: memref<16x32xf32, #tpu.memory_space<vmem>>, %arg3: memref<16x1xi32, #tpu.memory_space<vmem>>, %arg4: memref<1x1x32xf32, #tpu.memory_space<vmem>>) attributes {dimension_semantics = [#tpu.dimension_semantics<parallel>], iteration_bounds = array<i64: 1>, scalar_prefetch = 0 : i64, scratch_operands = 0 : i64, tpu.core_type = #tpu.core_type<tc>, window_params = [{transform_indices = @transform_0, window_bounds = array<i64: 16, 32>}, {transform_indices = @transform_1, window_bounds = array<i64: 16, 32>}, {transform_indices = @transform_2, window_bounds = array<i64: 16, 1>}, {transform_indices = @transform_3, window_bounds = array<i64: 1, 1, 32>}]} {
    %c0 = arith.constant 0 : index
    %c0_0 = arith.constant 0 : index
    %0 = vector.load %arg1[%c0, %c0_0] : memref<16x32xf32, #tpu.memory_space<vmem>>, vector<16x32xf32>
    %cst = arith.constant 5.000000e-01 : f32
    %1 = vector.broadcast %cst : f32 to vector<16x32xf32>
    %2 = arith.mulf %0, %1 : vector<16x32xf32>
    %c0_1 = arith.constant 0 : index
    %c0_2 = arith.constant 0 : index
    %3 = vector.load %arg2[%c0_1, %c0_2] : memref<16x32xf32, #tpu.memory_space<vmem>>, vector<16x32xf32>
    %cst_3 = arith.constant 5.000000e-01 : f32
    %4 = vector.broadcast %cst_3 : f32 to vector<16x32xf32>
    %5 = arith.mulf %3, %4 : vector<16x32xf32>
    %cst_4 = arith.constant dense<0xFF800000> : vector<16xf32>
    %6 = vector.multi_reduction <maximumf>, %2, %cst_4 [1] : vector<16x32xf32> to vector<16xf32>
    %7 = vector.shape_cast %6 : vector<16xf32> to vector<16x1xf32>
    %8 = vector.broadcast %7 : vector<16x1xf32> to vector<16x32xf32>
    %9 = arith.subf %2, %8 : vector<16x32xf32>
    %10 = math.exp %9 : vector<16x32xf32>
    %cst_5 = arith.constant dense<0.000000e+00> : vector<16xf32>
    %11 = vector.multi_reduction <add>, %10, %cst_5 [1] : vector<16x32xf32> to vector<16xf32>
    %12 = vector.shape_cast %11 : vector<16xf32> to vector<16x1xf32>
    %13 = tpu.reciprocal %12 : vector<16x1xf32> -> vector<16x1xf32>
    %14 = vector.broadcast %13 : vector<16x1xf32> to vector<16x32xf32>
    %15 = arith.mulf %10, %14 : vector<16x32xf32>
    %cst_6 = arith.constant dense<0xFF800000> : vector<16xf32>
    %16 = vector.multi_reduction <maximumf>, %5, %cst_6 [1] : vector<16x32xf32> to vector<16xf32>
    %17 = vector.shape_cast %16 : vector<16xf32> to vector<16x1xf32>
    %18 = vector.broadcast %17 : vector<16x1xf32> to vector<16x32xf32>
    %19 = arith.subf %5, %18 : vector<16x32xf32>
    %20 = math.exp %19 : vector<16x32xf32>
    %cst_7 = arith.constant dense<0.000000e+00> : vector<16xf32>
    %21 = vector.multi_reduction <add>, %20, %cst_7 [1] : vector<16x32xf32> to vector<16xf32>
    %22 = vector.shape_cast %21 : vector<16xf32> to vector<16x1xf32>
    %23 = tpu.reciprocal %22 : vector<16x1xf32> -> vector<16x1xf32>
    %24 = vector.broadcast %23 : vector<16x1xf32> to vector<16x32xf32>
    %25 = arith.mulf %20, %24 : vector<16x32xf32>
    %26 = math.exp %15 : vector<16x32xf32>
    %cst_8 = arith.constant dense<0.000000e+00> : vector<16xf32>
    %27 = vector.multi_reduction <add>, %26, %cst_8 [1] : vector<16x32xf32> to vector<16xf32>
    %28 = vector.shape_cast %27 : vector<16xf32> to vector<16x1xf32>
    %29 = math.log %28 : vector<16x1xf32>
    %30 = vector.broadcast %29 : vector<16x1xf32> to vector<16x32xf32>
    %31 = arith.subf %15, %30 : vector<16x32xf32>
    %32 = tpu.iota {dimensions = array<i32: 1>} : vector<16x32xi32>
    %c0_9 = arith.constant 0 : index
    %c0_10 = arith.constant 0 : index
    %33 = vector.load %arg3[%c0_9, %c0_10] : memref<16x1xi32, #tpu.memory_space<vmem>>, vector<16x1xi32>
    %34 = vector.broadcast %33 : vector<16x1xi32> to vector<16x32xi32>
    %35 = arith.cmpi eq, %32, %34 : vector<16x32xi32>
    %36 = arith.extui %35 : vector<16x32xi1> to vector<16x32xi32>
    %37 = arith.sitofp %36 : vector<16x32xi32> to vector<16x32xf32>
    %38 = arith.addf %37, %25 : vector<16x32xf32>
    %39 = arith.mulf %38, %31 : vector<16x32xf32>
    %cst_11 = arith.constant dense<0.000000e+00> : vector<32xf32>
    %40 = vector.multi_reduction <add>, %39, %cst_11 [0] : vector<16x32xf32> to vector<32xf32>
    %41 = vector.shape_cast %40 : vector<32xf32> to vector<1x32xf32>
    %cst_12 = arith.constant 0.000000e+00 : f32
    %42 = vector.broadcast %cst_12 : f32 to vector<1x32xf32>
    %43 = arith.subf %42, %41 : vector<1x32xf32>
    %44 = vector.shape_cast %43 : vector<1x32xf32> to vector<1x1x32xf32>
    %c0_13 = arith.constant 0 : index
    %c0_14 = arith.constant 0 : index
    %c0_15 = arith.constant 0 : index
    %45 = vector.load %arg4[%c0_13, %c0_14, %c0_15] : memref<1x1x32xf32, #tpu.memory_space<vmem>>, vector<1x1x32xf32>
    tpu.vector_store %arg4[%c0_13, %c0_14, %c0_15], %44 {strides = array<i32>} : memref<1x1x32xf32, #tpu.memory_space<vmem>>, vector<1x1x32xf32>,
    return
  }
  func.func @transform_0(%arg0: i32) -> (i32, i32) {
    %c0_i32 = arith.constant 0 : i32
    %c0_i32_0 = arith.constant 0 : i32
    return %arg0, %c0_i32 : i32, i32
  }
  func.func @transform_1(%arg0: i32) -> (i32, i32) {
    %c0_i32 = arith.constant 0 : i32
    %c0_i32_0 = arith.constant 0 : i32
    return %arg0, %c0_i32 : i32, i32
  }
  func.func @transform_2(%arg0: i32) -> (i32, i32) {
    %c0_i32 = arith.constant 0 : i32
    %c0_i32_0 = arith.constant 0 : i32
    return %arg0, %c0_i32 : i32, i32
  }
  func.func @transform_3(%arg0: i32) -> (i32, i32, i32) {
    %c0_i32 = arith.constant 0 : i32
    %c0_i32_0 = arith.constant 0 : i32
    %c0_i32_1 = arith.constant 0 : i32
    return %arg0, %c0_i32, %c0_i32_0 : i32, i32, i32
  }
}

</mosaic_0001>

<llo_original>
// kernel: tpu_custom_call.1
$region0: #{tpu_custom_call.1}
  #allocation0 [shape = 'u32[]', space=smem, size = 0x4, offset = 0x4, fixed_abs, tag = 'smem constant byte address 0x4 - core index']
  #allocation1 [shape = 'u32[72,128]{1,0:T(1,128)}', space=vmem, size = 0x9000, scoped, tag = 'internal scratch']
  %s0 = inlined_call_operand.vmem [shape: f32[16,32], index: 0, kind: input, shape index: {}]
  %s1 = inlined_call_operand.hbm [shape: f32[16,32], index: 1, kind: input, shape index: {}]
  %s2 = inlined_call_operand.vmem [shape: s32[16,1], index: 2, kind: input, shape index: {}]
  %s3 = inlined_call_operand.hbm [shape: f32[1,1,32], index: 3, kind: output, shape index: {}]
  %s4 = sld [smem:[#allocation0]]
  $region26: #{tpu_custom_call.1} parent=0
    _
  %s6 = ssub.s32 1, %s4
  %s7 = scalar_select 0, %s6, %s4
  $region1: #{tpu_custom_call.1} parent=0
    #allocation2 [shape = 'u8[8192]{0}', space=vmem, size = 0x2000, scoped, tag = 'input window, operand 1, single buffered']
    #allocation3 [shape = 's32[1]{0}', space=sflag, size = 0x4, scoped, tag = 'scoped memory for tpu_custom_call.1']
    #allocation4 [shape = 's32[1]{0}', space=sflag, size = 0x4, scoped, tag = 'scoped memory for tpu_custom_call.1']
    #allocation5 [shape = 'u8[512]{0}', space=vmem, size = 0x400, scoped, tag = 'output window, operand 0, single buffered']
    %8 = vsyncpa [#allocation3], 0
    %9 = vsyncpa [#allocation4], 0
    // Predicated region
    $region2: #{tpu_custom_call.1} parent=1 // pred_check
      _
    $region3: #{tpu_custom_call.1} parent=1 // pred_check_branch
      %11 = sbr.rel (0) target = $region5
    $region4: #{tpu_custom_call.1} parent=1 // pred_region
      _
    $region5: #{tpu_custom_call.1} parent=1 // pred_fallthru
      _
    // Predicated region
    $region6: #{tpu_custom_call.1} parent=1 // pred_check
      _
    $region7: #{tpu_custom_call.1} parent=1 // pred_check_branch
      %13 = sbr.rel (0) target = $region9
    $region8: #{tpu_custom_call.1} parent=1 // pred_region
      %15 = vsyncadd [#allocation3], 0
      %s16 = sshll.u32 %s1, 4
      %s17 = int_to_ptr.hbm [resolvable:$true] %s16
      %s18 = sshll.u32 [#allocation2], 4
      %s19 = int_to_ptr.vmem [resolvable:$true] %s18
      %24 = dma.hbm_to_vmem [thread:$0]  %s17, 256, %s19, [#allocation3], 128, 128, 8
    $region9: #{tpu_custom_call.1} parent=1 // pred_fallthru
      _
    // Predicated region
    $region10: #{tpu_custom_call.1} parent=1 // pred_check
      _
    $region11: #{tpu_custom_call.1} parent=1 // pred_check_branch
      %26 = sbr.rel (0) target = $region13
    $region12: #{tpu_custom_call.1} parent=1 // pred_region
      _
    $region13: #{tpu_custom_call.1} parent=1 // pred_fallthru
      _
    // Predicated region
    $region14: #{tpu_custom_call.1} parent=1 // pred_check
      _
    $region15: #{tpu_custom_call.1} parent=1 // pred_check_branch
      %28 = sbr.rel (0) target = $region17
    $region16: #{tpu_custom_call.1} parent=1 // pred_region
      %30 = dma.done [#allocation3], 256
    $region17: #{tpu_custom_call.1} parent=1 // pred_fallthru
      _
    %v31 = vld [vmem:[%s0] sm:$0xff]
    %v32 = vld [vmem:[%s0 + $0x8] sm:$0xff]
    %v33 = vmul.f32 %v31, 0.5
    %v34 = vmul.f32 %v32, 0.5
    %v35 = vld [vmem:[#allocation2] sm:$0xff]
    %v36 = vld [vmem:[#allocation2 + $0x8] sm:$0xff]
    %v37 = vmul.f32 %v35, 0.5
    %v38 = vmul.f32 %v36, 0.5
    %vm39 = vcmask 261120
    %v40 = vsel %vm39, %v33, -inf
    %41 = vmax.xlane.f32.xlu0 %v40
    %v42 = vpop.xlane.xlu0 %41
    %v43 = vsel %vm39, %v34, -inf
    %44 = vmax.xlane.f32.xlu0 %v43
    %v45 = vpop.xlane.xlu0 %44
    %v46 = vsub.f32 %v33, %v42
    %v47 = vsub.f32 %v34, %v45
    %v48 = vmul.f32 %v46, 1.442695
    %v49 = vpow.pop %v48
    %v50 = vmul.f32 %v47, 1.442695
    %v51 = vpow.pop %v50
    %v52 = vsel %vm39, %v49, 0.0
    %53 = vadd.xlane.f32.xlu0 %v52
    %v54 = vpop.xlane.xlu0 %53
    %v55 = vsel %vm39, %v51, 0.0
    %56 = vadd.xlane.f32.xlu0 %v55
    %v57 = vpop.xlane.xlu0 %56
    %v58 = vrcp.pop %v54
    %v59 = vmul.f32 %v54, %v58
    %v60 = vsub.f32 1.0, %v59
    %v61 = vmul.f32 %v58, %v60
    %v62 = vadd.f32 %v58, %v61
    %vm63 = vweird.f32 %v54
    %vm64 = vweird.f32 %v58
    %vm65 = vmor %vm63, %vm64
    %v66 = vsel %vm65, %v58, %v62
    %v67 = vand.u32 2147483647, %v54
    %vm68 = vcmp.eq.f32.partialorder %v67, 8.507059e+37
    %v69 = vand.u32 %v54, 2147483648
    %v70 = vor.u32 1.1754944e-38, %v69
    %v71 = vsel %vm68, %v70, %v66
    %v72 = vrcp.pop %v57
    %v73 = vmul.f32 %v57, %v72
    %v74 = vsub.f32 1.0, %v73
    %v75 = vmul.f32 %v72, %v74
    %v76 = vadd.f32 %v72, %v75
    %vm77 = vweird.f32 %v57
    %vm78 = vweird.f32 %v72
    %vm79 = vmor %vm77, %vm78
    %v80 = vsel %vm79, %v72, %v76
    %v81 = vand.u32 2147483647, %v57
    %vm82 = vcmp.eq.f32.partialorder %v81, 8.507059e+37
    %v83 = vand.u32 %v57, 2147483648
    %v84 = vor.u32 1.1754944e-38, %v83
    %v85 = vsel %vm82, %v84, %v80
    %v86 = vmul.f32 %v49, %v71
    %v87 = vmul.f32 %v51, %v85
    %v88 = vsel %vm39, %v37, -inf
    %89 = vmax.xlane.f32.xlu0 %v88
    %v90 = vpop.xlane.xlu0 %89
    %v91 = vsel %vm39, %v38, -inf
    %92 = vmax.xlane.f32.xlu0 %v91
    %v93 = vpop.xlane.xlu0 %92
    %v94 = vsub.f32 %v37, %v90
    %v95 = vsub.f32 %v38, %v93
    %v96 = vmul.f32 %v94, 1.442695
    %v97 = vpow.pop %v96
    %v98 = vmul.f32 %v95, 1.442695
    %v99 = vpow.pop %v98
    %v100 = vsel %vm39, %v97, 0.0
    %101 = vadd.xlane.f32.xlu0 %v100
    %v102 = vpop.xlane.xlu0 %101
    %v103 = vsel %vm39, %v99, 0.0
    %104 = vadd.xlane.f32.xlu0 %v103
    %v105 = vpop.xlane.xlu0 %104
    %v106 = vrcp.pop %v102
    %v107 = vmul.f32 %v102, %v106
    %v108 = vsub.f32 1.0, %v107
    %v109 = vmul.f32 %v106, %v108
    %v110 = vadd.f32 %v106, %v109
    %vm111 = vweird.f32 %v102
    %vm112 = vweird.f32 %v106
    %vm113 = vmor %vm111, %vm112
    %v114 = vsel %vm113, %v106, %v110
    %v115 = vand.u32 2147483647, %v102
    %vm116 = vcmp.eq.f32.partialorder %v115, 8.507059e+37
    %v117 = vand.u32 %v102, 2147483648
    %v118 = vor.u32 1.1754944e-38, %v117
    %v119 = vsel %vm116, %v118, %v114
    %v120 = vrcp.pop %v105
    %v121 = vmul.f32 %v105, %v120
    %v122 = vsub.f32 1.0, %v121
    %v123 = vmul.f32 %v120, %v122
    %v124 = vadd.f32 %v120, %v123
    %vm125 = vweird.f32 %v105
    %vm126 = vweird.f32 %v120
    %vm127 = vmor %vm125, %vm126
    %v128 = vsel %vm127, %v120, %v124
    %v129 = vand.u32 2147483647, %v105
    %vm130 = vcmp.eq.f32.partialorder %v129, 8.507059e+37
    %v131 = vand.u32 %v105, 2147483648
    %v132 = vor.u32 1.1754944e-38, %v131
    %v133 = vsel %vm130, %v132, %v128
    %v134 = vmul.f32 %v97, %v119
    %v135 = vmul.f32 %v99, %v133
    %v136 = vmul.f32 %v86, 1.442695
    %v137 = vpow.pop %v136
    %v138 = vmul.f32 %v87, 1.442695
    %v139 = vpow.pop %v138
    %v140 = vsel %vm39, %v137, 0.0
    %141 = vadd.xlane.f32.xlu0 %v140
    %v142 = vpop.xlane.xlu0 %141
    %v143 = vsel %vm39, %v139, 0.0
    %144 = vadd.xlane.f32.xlu0 %v143
    %v145 = vpop.xlane.xlu0 %144
    %v146 = vlog2.pop %v142
    %v147 = vmul.f32 %v146, 0.6931472
    %v148 = vlog2.pop %v145
    %v149 = vmul.f32 %v148, 0.6931472
    %v150 = vsub.f32 %v86, %v147
    %v151 = vsub.f32 %v87, %v149
    %v152 = vlaneseq
    %v153 = vand.u32 %v152, 127
    %v154 = vld [vmem:[%s2] sm:$0xff]
    %v155 = vld [vmem:[%s2 + $0x8] sm:$0xff]
    %156 = vset.pattern.permute.xlu0 0
    %157 = vperm.xlu0 %156, %v154
    %v158 = vpop.permute.xlu0 %157
    %159 = vset.pattern.permute.xlu0 0
    %160 = vperm.xlu0 %159, %v155
    %v161 = vpop.permute.xlu0 %160
    %vm162 = vcmp.eq.s32.totalorder %v153, %v158
    %vm163 = vcmp.eq.s32.totalorder %v153, %v161
    %v164 = vsel %vm162, 1, 0
    %v165 = vsel %vm163, 1, 0
    %v166 = vcvt.s32.f32 %v164
    %v167 = vcvt.s32.f32 %v165
    %v168 = vadd.f32 %v166, %v134
    %v169 = vadd.f32 %v167, %v135
    %v170 = vmul.f32 %v168, %v150
    %v171 = vmul.f32 %v169, %v151
    %v172 = vsel %vm39, %v170, 0.0
    %v173 = vsel %vm39, %v171, 0.0
    %v174 = vadd.f32 %v172, %v173
    %v175 = vrot.slane %v174, 4
    %v176 = vadd.f32 %v174, %v175
    %v177 = vrot.slane %v176, 2
    %v178 = vadd.f32 %v176, %v177
    %v179 = vrot.slane %v178, 1
    %v180 = vadd.f32 %v178, %v179
    %v181 = vsub.f32 0.0, %v180
    %vm182 = vcmask 253952
    %183 = vst.msk [vmem:[#allocation5] sm:$0x1] %vm182, %v181
    // Predicated region
    $region18: #{tpu_custom_call.1} parent=1 // pred_check
      _
    $region19: #{tpu_custom_call.1} parent=1 // pred_check_branch
      %185 = sbr.rel (0) target = $region21
    $region20: #{tpu_custom_call.1} parent=1 // pred_region
      %187 = vsyncadd [#allocation4], 0
      %s189 = sshll.u32 [#allocation5], 4
      %s190 = int_to_ptr.vmem [resolvable:$true] %s189
      %s191 = sshll.u32 %s3, 4
      %s192 = int_to_ptr.hbm [resolvable:$true] %s191
      %194 = dma.vmem_to_hbm [thread:$0]  %s190, 16, %s192, [#allocation4]
    $region21: #{tpu_custom_call.1} parent=1 // pred_fallthru
      _
    // Predicated region
    $region22: #{tpu_custom_call.1} parent=1 // pred_check
      _
    $region23: #{tpu_custom_call.1} parent=1 // pred_check_branch
      %196 = sbr.rel (0) target = $region25
    $region24: #{tpu_custom_call.1} parent=1 // pred_region
      %198 = dma.done [#allocation4], 16
    $region25: #{tpu_custom_call.1} parent=1 // pred_fallthru
      _
    %199 = vsyncpa [#allocation3], 1
    %200 = vsyncpa [#allocation4], 1

</llo_original>
